<compile_context>
chip_gen: v7x
topology: tpu7x:2x2x1
jax: 0.10.0
libtpu: 0.0.40
codegen_flags: <defaults>
</compile_context>

<pallas_src>
import functools

import jax
import jax.numpy as jnp
from jax.experimental import pallas as pl
from jax.experimental.pallas import tpu as pltpu

_LANE = 128


def _round_up(x, m):
    return ((x + m - 1) // m) * m


def _pick_batch_tile(batch, requested=None):
    """Pick a batch tile that divides B and satisfies the (8,128) sublane rule."""
    if requested is not None:
        assert batch % requested == 0, "batch_tile must divide batch"
        return requested
    if batch <= 1024:
        # Prefer >= 2 grid steps when the batch is big enough so both v7x
        # TensorCores get work; otherwise take the whole batch in one tile.
        if batch >= 16 and batch % 2 == 0 and (batch // 2) % 8 == 0:
            return batch // 2
        return batch
    # Large batch: biggest multiple-of-8 tile <= 1024 that divides B.
    for tb in range(1024, 7, -8):
        if batch % tb == 0:
            return tb
    return batch  # fallback: single tile (block dim == full array dim is legal)


def _vmem_estimate_bytes(tb, obs_dim, state_dim, hidden_dim, out_pad):
    """Rough per-tile VMEM footprint: resident weights + double-buffered I/O."""
    bf16, f32 = 2, 4
    weights = (
        obs_dim * hidden_dim + hidden_dim * hidden_dim + hidden_dim * out_pad
        + state_dim * hidden_dim + hidden_dim * hidden_dim + hidden_dim * out_pad
    ) * bf16
    biases = (2 * hidden_dim + out_pad) * 2 * f32
    acts = 2 * tb * (obs_dim + state_dim) * f32        # double-buffered inputs
    outs = 2 * 2 * tb * out_pad * f32                  # double-buffered outputs
    return weights + biases + acts + outs


# ----------------------------------------------------------------------------
# Fused actor+critic kernel: two 3-layer MLPs (Linear->ReLU->Linear->ReLU->Linear)
# ----------------------------------------------------------------------------
def _fused_actor_critic_kernel(
    obs_ref, state_ref,
    aw1_ref, ab1_ref, aw2_ref, ab2_ref, aw3_ref, ab3_ref,
    cw1_ref, cb1_ref, cw2_ref, cb2_ref, cw3_ref, cb3_ref,
    logits_ref, value_ref,
):
    def mlp3(x_bf16, w1_ref, b1_ref, w2_ref, b2_ref, w3_ref, b3_ref):
        # bf16 MXU matmuls with f32 accumulation; bias adds stay in f32 (VPU).
        h = jnp.dot(x_bf16, w1_ref[...], preferred_element_type=jnp.float32)
        h = jnp.maximum(h + b1_ref[...], 0.0).astype(jnp.bfloat16)
        h = jnp.dot(h, w2_ref[...], preferred_element_type=jnp.float32)
        h = jnp.maximum(h + b2_ref[...], 0.0).astype(jnp.bfloat16)
        o = jnp.dot(h, w3_ref[...], preferred_element_type=jnp.float32)
        return o + b3_ref[...]

    obs = obs_ref[...].astype(jnp.bfloat16)
    st = state_ref[...].astype(jnp.bfloat16)

    logits_ref[...] = mlp3(
        obs, aw1_ref, ab1_ref, aw2_ref, ab2_ref, aw3_ref, ab3_ref
    ).astype(logits_ref.dtype)
    value_ref[...] = mlp3(
        st, cw1_ref, cb1_ref, cw2_ref, cb2_ref, cw3_ref, cb3_ref
    ).astype(value_ref.dtype)


def actor_critic_fused(obs, state, actor_layers, critic_layers, *, batch_tile=None):
    """Fused forward: returns (logits [B, action_dim], value [B])."""
    B, obs_dim = obs.shape
    Bs, state_dim = state.shape
    assert B == Bs, "obs and state must share the batch dimension"

    (aw1, ab1), (aw2, ab2), (aw3, ab3) = actor_layers
    (cw1, cb1), (cw2, cb2), (cw3, cb3) = critic_layers
    hidden_dim = aw1.shape[1]
    action_dim = aw3.shape[1]

    # Lane-dense output slab width (multiple of 128) shared by actor & critic.
    out_pad = _round_up(max(action_dim, 1), _LANE)

    def pad_cols(a):
        pad = out_pad - a.shape[-1]
        return a if pad == 0 else jnp.pad(a, ((0, 0), (0, pad)))

    bf16 = lambda w: w.astype(jnp.bfloat16)

    # Weights in bf16 (halves weight DMA + bf16-native MXU); biases stay f32.
    aw1b, aw2b, aw3b = bf16(aw1), bf16(aw2), bf16(pad_cols(aw3))
    cw1b, cw2b, cw3b = bf16(cw1), bf16(cw2), bf16(pad_cols(cw3))
    ab3p, cb3p = pad_cols(ab3), pad_cols(cb3)

    tb = _pick_batch_tile(B, batch_tile)
    grid = (B // tb,)

    def tiled(shape):  # batch-tiled operand
        return pl.BlockSpec(shape, lambda i: (i, 0))

    def resident(shape):  # fully resident weight/bias (same block every step)
        return pl.BlockSpec(shape, lambda i: (0, 0))

    in_specs = [
        tiled((tb, obs_dim)),
        tiled((tb, state_dim)),
        resident((obs_dim, hidden_dim)), resident((1, hidden_dim)),
        resident((hidden_dim, hidden_dim)), resident((1, hidden_dim)),
        resident((hidden_dim, out_pad)), resident((1, out_pad)),
        resident((state_dim, hidden_dim)), resident((1, hidden_dim)),
        resident((hidden_dim, hidden_dim)), resident((1, hidden_dim)),
        resident((hidden_dim, out_pad)), resident((1, out_pad)),
    ]
    out_specs = (tiled((tb, out_pad)), tiled((tb, out_pad)))
    out_shape = (
        jax.ShapeDtypeStruct((B, out_pad), obs.dtype),
        jax.ShapeDtypeStruct((B, out_pad), state.dtype),
    )

    # Only raise the scoped-VMEM limit when the resident-weight strategy needs
    # it (v5e default is 16 MiB); clamp so it never exceeds v7x's 64 MiB.
    # TODO(synk): for hidden_dim >~ 2048, tile the hidden (K/N) dims with an
    # accumulator instead of keeping all weights resident (v7x VMEM = 64 MiB).
    vmem_needed = _vmem_estimate_bytes(tb, obs_dim, state_dim, hidden_dim, out_pad)
    cp_kwargs = dict(dimension_semantics=("parallel",))
    if vmem_needed > 16 * 1024 * 1024:
        cp_kwargs["vmem_limit_bytes"] = min(int(1.5 * vmem_needed), 64 * 1024 * 1024)

    logits_pad, value_pad = pl.pallas_call(
        _fused_actor_critic_kernel,
        out_shape=out_shape,
        grid_spec=pltpu.PrefetchScalarGridSpec(
            num_scalar_prefetch=0,
            grid=grid,
            in_specs=in_specs,
            out_specs=out_specs,
        ),
        compiler_params=pltpu.CompilerParams(**cp_kwargs),
    )(
        obs, state,
        aw1b, ab1, aw2b, ab2, aw3b, ab3p,
        cw1b, cb1, cw2b, cb2, cw3b, cb3p,
    )

    # TODO(synk): on v7x with B too small to split over batch, a leading size-2
    # "parallel" grid axis (actor on TC0, critic on TC1) would use both cores.
    logits = logits_pad[:, :action_dim]
    value = value_pad[:, 0]
    return logits, value


# ----------------------------------------------------------------------------
# ActorCritic wrapper (forward pass)
# ----------------------------------------------------------------------------
def init_linear_params(key, in_dim, out_dim, dtype=jnp.float32):
    """Deterministic init mirroring nn.Linear's U(-1/sqrt(in), 1/sqrt(in))."""
    kw, kb = jax.random.split(key)
    bound = 1.0 / jnp.sqrt(jnp.asarray(in_dim, dtype))
    w = jax.random.uniform(kw, (in_dim, out_dim), dtype, -bound, bound)
    b = jax.random.uniform(kb, (1, out_dim), dtype, -bound, bound)
    return w, b


def init_actor_critic_params(key, obs_dim, state_dim, action_dim, hidden_dim):
    keys = jax.random.split(key, 6)
    return {
        "actor": [
            init_linear_params(keys[0], obs_dim, hidden_dim),
            init_linear_params(keys[1], hidden_dim, hidden_dim),
            init_linear_params(keys[2], hidden_dim, action_dim),
        ],
        "critic": [
            init_linear_params(keys[3], state_dim, hidden_dim),
            init_linear_params(keys[4], hidden_dim, hidden_dim),
            init_linear_params(keys[5], hidden_dim, 1),
        ],
    }


@functools.partial(jax.jit, static_argnames=())
def actor_critic_forward(params, obs, state):
    """Equivalent of ActorCritic.forward: (actor(obs), critic(state).squeeze(-1))."""
    return actor_critic_fused(obs, state, params["actor"], params["critic"])


def _reference_forward(params, obs, state):
    """Pure-JAX reference mirroring the kernel's bf16-matmul / f32-accum path."""
    def mlp(x, layers):
        x = x.astype(jnp.bfloat16)
        y = None
        for i, (w, b) in enumerate(layers):
            y = jnp.dot(x, w.astype(jnp.bfloat16),
                        preferred_element_type=jnp.float32) + b
            if i < len(layers) - 1:
                x = jnp.maximum(y, 0.0).astype(jnp.bfloat16)
        return y

    logits = mlp(obs, params["actor"])
    value = mlp(state, params["critic"])
    return logits, jnp.squeeze(value, axis=-1)


if __name__ == "__main__":
    # Small shapes consistent with the module's config-driven dims.
    batch = 8
    obs_dim = 32
    state_dim = 48
    action_dim = 12
    hidden_dim = 32

    key = jax.random.PRNGKey(0)
    k_params, k_obs, k_state = jax.random.split(key, 3)

    params = init_actor_critic_params(
        k_params, obs_dim, state_dim, action_dim, hidden_dim
    )
    obs = jax.random.normal(k_obs, (batch, obs_dim), jnp.float32)
    state = jax.random.normal(k_state, (batch, state_dim), jnp.float32)

    logits, value = actor_critic_forward(params, obs, state)
    jax.block_until_ready((logits, value))

    # Correctness check against a pure-JAX reference (bf16 matmul tolerance).
    ref_logits, ref_value = _reference_forward(params, obs, state)
    assert logits.shape == (batch, action_dim)
    assert value.shape == (batch,)
    assert jnp.allclose(logits, ref_logits, atol=1e-2, rtol=1e-2)
    assert jnp.allclose(value, ref_value, atol=1e-2, rtol=1e-2)

    print("KERNEL_OK")
</pallas_src>

<mosaic_0001>
module attributes {stable_mosaic.version = 11 : i64} {
  func.func @_fused_actor_critic_kernel(%arg0: i32, %arg1: memref<8x32xf32, #tpu.memory_space<vmem>>, %arg2: memref<8x48xf32, #tpu.memory_space<vmem>>, %arg3: memref<32x32xbf16, #tpu.memory_space<vmem>>, %arg4: memref<1x32xf32, #tpu.memory_space<vmem>>, %arg5: memref<32x32xbf16, #tpu.memory_space<vmem>>, %arg6: memref<1x32xf32, #tpu.memory_space<vmem>>, %arg7: memref<32x128xbf16, #tpu.memory_space<vmem>>, %arg8: memref<1x128xf32, #tpu.memory_space<vmem>>, %arg9: memref<48x32xbf16, #tpu.memory_space<vmem>>, %arg10: memref<1x32xf32, #tpu.memory_space<vmem>>, %arg11: memref<32x32xbf16, #tpu.memory_space<vmem>>, %arg12: memref<1x32xf32, #tpu.memory_space<vmem>>, %arg13: memref<32x128xbf16, #tpu.memory_space<vmem>>, %arg14: memref<1x128xf32, #tpu.memory_space<vmem>>, %arg15: memref<8x128xf32, #tpu.memory_space<vmem>>, %arg16: memref<8x128xf32, #tpu.memory_space<vmem>>) attributes {dimension_semantics = [#tpu.dimension_semantics<parallel>], iteration_bounds = array<i64: 1>, scalar_prefetch = 0 : i64, scratch_operands = 0 : i64, tpu.core_type = #tpu.core_type<tc>, window_params = [{transform_indices = @transform_0, window_bounds = array<i64: 8, 32>}, {transform_indices = @transform_1, window_bounds = array<i64: 8, 48>}, {pipeline_mode = #tpu.pipeline_mode<synchronous>, transform_indices = @transform_2, window_bounds = array<i64: 32, 32>}, {pipeline_mode = #tpu.pipeline_mode<synchronous>, transform_indices = @transform_3, window_bounds = array<i64: 1, 32>}, {pipeline_mode = #tpu.pipeline_mode<synchronous>, transform_indices = @transform_4, window_bounds = array<i64: 32, 32>}, {pipeline_mode = #tpu.pipeline_mode<synchronous>, transform_indices = @transform_5, window_bounds = array<i64: 1, 32>}, {pipeline_mode = #tpu.pipeline_mode<synchronous>, transform_indices = @transform_6, window_bounds = array<i64: 32, 128>}, {pipeline_mode = #tpu.pipeline_mode<synchronous>, transform_indices = @transform_7, window_bounds = array<i64: 1, 128>}, {pipeline_mode = #tpu.pipeline_mode<synchronous>, transform_indices = @transform_8, window_bounds = array<i64: 48, 32>}, {pipeline_mode = #tpu.pipeline_mode<synchronous>, transform_indices = @transform_9, window_bounds = array<i64: 1, 32>}, {pipeline_mode = #tpu.pipeline_mode<synchronous>, transform_indices = @transform_10, window_bounds = array<i64: 32, 32>}, {pipeline_mode = #tpu.pipeline_mode<synchronous>, transform_indices = @transform_11, window_bounds = array<i64: 1, 32>}, {pipeline_mode = #tpu.pipeline_mode<synchronous>, transform_indices = @transform_12, window_bounds = array<i64: 32, 128>}, {pipeline_mode = #tpu.pipeline_mode<synchronous>, transform_indices = @transform_13, window_bounds = array<i64: 1, 128>}, {transform_indices = @transform_14, window_bounds = array<i64: 8, 128>}, {transform_indices = @transform_15, window_bounds = array<i64: 8, 128>}]} {
    %c0 = arith.constant 0 : index
    %c0_0 = arith.constant 0 : index
    %0 = vector.load %arg1[%c0, %c0_0] : memref<8x32xf32, #tpu.memory_space<vmem>>, vector<8x32xf32>
    %1 = arith.truncf %0 : vector<8x32xf32> to vector<8x32xbf16>
    %c0_1 = arith.constant 0 : index
    %c0_2 = arith.constant 0 : index
    %2 = vector.load %arg2[%c0_1, %c0_2] : memref<8x48xf32, #tpu.memory_space<vmem>>, vector<8x48xf32>
    %3 = arith.truncf %2 : vector<8x48xf32> to vector<8x48xbf16>
    %c0_3 = arith.constant 0 : index
    %c0_4 = arith.constant 0 : index
    %4 = vector.load %arg3[%c0_3, %c0_4] : memref<32x32xbf16, #tpu.memory_space<vmem>>, vector<32x32xbf16>
    %cst = arith.constant dense<0.000000e+00> : vector<8x32xf32>
    %5 = tpu.matmul %1, %4, %cst {dimension_numbers = #tpu.dot_dimension_numbers<[1], [0], [0], [1], [0, 0, 1, 1], [], []>} : vector<8x32xbf16>, vector<32x32xbf16>, vector<8x32xf32> -> vector<8x32xf32>
    %c0_5 = arith.constant 0 : index
    %c0_6 = arith.constant 0 : index
    %6 = vector.load %arg4[%c0_5, %c0_6] : memref<1x32xf32, #tpu.memory_space<vmem>>, vector<1x32xf32>
    %7 = vector.broadcast %6 : vector<1x32xf32> to vector<8x32xf32>
    %8 = arith.addf %5, %7 : vector<8x32xf32>
    %cst_7 = arith.constant 0.000000e+00 : f32
    %9 = vector.broadcast %cst_7 : f32 to vector<8x32xf32>
    %10 = arith.maximumf %8, %9 : vector<8x32xf32>
    %11 = arith.truncf %10 : vector<8x32xf32> to vector<8x32xbf16>
    %c0_8 = arith.constant 0 : index
    %c0_9 = arith.constant 0 : index
    %12 = vector.load %arg5[%c0_8, %c0_9] : memref<32x32xbf16, #tpu.memory_space<vmem>>, vector<32x32xbf16>
    %cst_10 = arith.constant dense<0.000000e+00> : vector<8x32xf32>
    %13 = tpu.matmul %11, %12, %cst_10 {dimension_numbers = #tpu.dot_dimension_numbers<[1], [0], [0], [1], [0, 0, 1, 1], [], []>} : vector<8x32xbf16>, vector<32x32xbf16>, vector<8x32xf32> -> vector<8x32xf32>
    %c0_11 = arith.constant 0 : index
    %c0_12 = arith.constant 0 : index
    %14 = vector.load %arg6[%c0_11, %c0_12] : memref<1x32xf32, #tpu.memory_space<vmem>>, vector<1x32xf32>
    %15 = vector.broadcast %14 : vector<1x32xf32> to vector<8x32xf32>
    %16 = arith.addf %13, %15 : vector<8x32xf32>
    %cst_13 = arith.constant 0.000000e+00 : f32
    %17 = vector.broadcast %cst_13 : f32 to vector<8x32xf32>
    %18 = arith.maximumf %16, %17 : vector<8x32xf32>
    %19 = arith.truncf %18 : vector<8x32xf32> to vector<8x32xbf16>
    %c0_14 = arith.constant 0 : index
    %c0_15 = arith.constant 0 : index
    %20 = vector.load %arg7[%c0_14, %c0_15] : memref<32x128xbf16, #tpu.memory_space<vmem>>, vector<32x128xbf16>
    %cst_16 = arith.constant dense<0.000000e+00> : vector<8x128xf32>
    %21 = tpu.matmul %19, %20, %cst_16 {dimension_numbers = #tpu.dot_dimension_numbers<[1], [0], [0], [1], [0, 0, 1, 1], [], []>} : vector<8x32xbf16>, vector<32x128xbf16>, vector<8x128xf32> -> vector<8x128xf32>
    %c0_17 = arith.constant 0 : index
    %c0_18 = arith.constant 0 : index
    %22 = vector.load %arg8[%c0_17, %c0_18] : memref<1x128xf32, #tpu.memory_space<vmem>>, vector<1x128xf32>
    %23 = vector.broadcast %22 : vector<1x128xf32> to vector<8x128xf32>
    %24 = arith.addf %21, %23 : vector<8x128xf32>
    %c0_19 = arith.constant 0 : index
    %c0_20 = arith.constant 0 : index
    %25 = vector.load %arg15[%c0_19, %c0_20] : memref<8x128xf32, #tpu.memory_space<vmem>>, vector<8x128xf32>
    tpu.vector_store %arg15[%c0_19, %c0_20], %24 {strides = array<i32>} : memref<8x128xf32, #tpu.memory_space<vmem>>, vector<8x128xf32>,
    %c0_21 = arith.constant 0 : index
    %c0_22 = arith.constant 0 : index
    %26 = vector.load %arg9[%c0_21, %c0_22] : memref<48x32xbf16, #tpu.memory_space<vmem>>, vector<48x32xbf16>
    %cst_23 = arith.constant dense<0.000000e+00> : vector<8x32xf32>
    %27 = tpu.matmul %3, %26, %cst_23 {dimension_numbers = #tpu.dot_dimension_numbers<[1], [0], [0], [1], [0, 0, 1, 1], [], []>} : vector<8x48xbf16>, vector<48x32xbf16>, vector<8x32xf32> -> vector<8x32xf32>
    %c0_24 = arith.constant 0 : index
    %c0_25 = arith.constant 0 : index
    %28 = vector.load %arg10[%c0_24, %c0_25] : memref<1x32xf32, #tpu.memory_space<vmem>>, vector<1x32xf32>
    %29 = vector.broadcast %28 : vector<1x32xf32> to vector<8x32xf32>
    %30 = arith.addf %27, %29 : vector<8x32xf32>
    %cst_26 = arith.constant 0.000000e+00 : f32
    %31 = vector.broadcast %cst_26 : f32 to vector<8x32xf32>
    %32 = arith.maximumf %30, %31 : vector<8x32xf32>
    %33 = arith.truncf %32 : vector<8x32xf32> to vector<8x32xbf16>
    %c0_27 = arith.constant 0 : index
    %c0_28 = arith.constant 0 : index
    %34 = vector.load %arg11[%c0_27, %c0_28] : memref<32x32xbf16, #tpu.memory_space<vmem>>, vector<32x32xbf16>
    %cst_29 = arith.constant dense<0.000000e+00> : vector<8x32xf32>
    %35 = tpu.matmul %33, %34, %cst_29 {dimension_numbers = #tpu.dot_dimension_numbers<[1], [0], [0], [1], [0, 0, 1, 1], [], []>} : vector<8x32xbf16>, vector<32x32xbf16>, vector<8x32xf32> -> vector<8x32xf32>
    %c0_30 = arith.constant 0 : index
    %c0_31 = arith.constant 0 : index
    %36 = vector.load %arg12[%c0_30, %c0_31] : memref<1x32xf32, #tpu.memory_space<vmem>>, vector<1x32xf32>
    %37 = vector.broadcast %36 : vector<1x32xf32> to vector<8x32xf32>
    %38 = arith.addf %35, %37 : vector<8x32xf32>
    %cst_32 = arith.constant 0.000000e+00 : f32
    %39 = vector.broadcast %cst_32 : f32 to vector<8x32xf32>
    %40 = arith.maximumf %38, %39 : vector<8x32xf32>
    %41 = arith.truncf %40 : vector<8x32xf32> to vector<8x32xbf16>
    %c0_33 = arith.constant 0 : index
    %c0_34 = arith.constant 0 : index
    %42 = vector.load %arg13[%c0_33, %c0_34] : memref<32x128xbf16, #tpu.memory_space<vmem>>, vector<32x128xbf16>
    %cst_35 = arith.constant dense<0.000000e+00> : vector<8x128xf32>
    %43 = tpu.matmul %41, %42, %cst_35 {dimension_numbers = #tpu.dot_dimension_numbers<[1], [0], [0], [1], [0, 0, 1, 1], [], []>} : vector<8x32xbf16>, vector<32x128xbf16>, vector<8x128xf32> -> vector<8x128xf32>
    %c0_36 = arith.constant 0 : index
    %c0_37 = arith.constant 0 : index
    %44 = vector.load %arg14[%c0_36, %c0_37] : memref<1x128xf32, #tpu.memory_space<vmem>>, vector<1x128xf32>
    %45 = vector.broadcast %44 : vector<1x128xf32> to vector<8x128xf32>
    %46 = arith.addf %43, %45 : vector<8x128xf32>
    %c0_38 = arith.constant 0 : index
    %c0_39 = arith.constant 0 : index
    %47 = vector.load %arg16[%c0_38, %c0_39] : memref<8x128xf32, #tpu.memory_space<vmem>>, vector<8x128xf32>
    tpu.vector_store %arg16[%c0_38, %c0_39], %46 {strides = array<i32>} : memref<8x128xf32, #tpu.memory_space<vmem>>, vector<8x128xf32>,
    return
  }
  func.func @transform_0(%arg0: i32) -> (i32, i32) {
    %c0_i32 = arith.constant 0 : i32
    %c0_i32_0 = arith.constant 0 : i32
    return %arg0, %c0_i32 : i32, i32
  }
  func.func @transform_1(%arg0: i32) -> (i32, i32) {
    %c0_i32 = arith.constant 0 : i32
    %c0_i32_0 = arith.constant 0 : i32
    return %arg0, %c0_i32 : i32, i32
  }
  func.func @transform_2(%arg0: i32) -> (i32, i32) {
    %c0_i32 = arith.constant 0 : i32
    %c0_i32_0 = arith.constant 0 : i32
    %c0_i32_1 = arith.constant 0 : i32
    return %c0_i32, %c0_i32_0 : i32, i32
  }
  func.func @transform_3(%arg0: i32) -> (i32, i32) {
    %c0_i32 = arith.constant 0 : i32
    %c0_i32_0 = arith.constant 0 : i32
    %c0_i32_1 = arith.constant 0 : i32
    return %c0_i32, %c0_i32_0 : i32, i32
  }
  func.func @transform_4(%arg0: i32) -> (i32, i32) {
    %c0_i32 = arith.constant 0 : i32
    %c0_i32_0 = arith.constant 0 : i32
    %c0_i32_1 = arith.constant 0 : i32
    return %c0_i32, %c0_i32_0 : i32, i32
  }
  func.func @transform_5(%arg0: i32) -> (i32, i32) {
    %c0_i32 = arith.constant 0 : i32
    %c0_i32_0 = arith.constant 0 : i32
    %c0_i32_1 = arith.constant 0 : i32
    return %c0_i32, %c0_i32_0 : i32, i32
  }
  func.func @transform_6(%arg0: i32) -> (i32, i32) {
    %c0_i32 = arith.constant 0 : i32
    %c0_i32_0 = arith.constant 0 : i32
    %c0_i32_1 = arith.constant 0 : i32
    return %c0_i32, %c0_i32_0 : i32, i32
  }
  func.func @transform_7(%arg0: i32) -> (i32, i32) {
    %c0_i32 = arith.constant 0 : i32
    %c0_i32_0 = arith.constant 0 : i32
    %c0_i32_1 = arith.constant 0 : i32
    return %c0_i32, %c0_i32_0 : i32, i32
  }
  func.func @transform_8(%arg0: i32) -> (i32, i32) {
    %c0_i32 = arith.constant 0 : i32
    %c0_i32_0 = arith.constant 0 : i32
    %c0_i32_1 = arith.constant 0 : i32
    return %c0_i32, %c0_i32_0 : i32, i32
  }
  func.func @transform_9(%arg0: i32) -> (i32, i32) {
    %c0_i32 = arith.constant 0 : i32
    %c0_i32_0 = arith.constant 0 : i32
    %c0_i32_1 = arith.constant 0 : i32
    return %c0_i32, %c0_i32_0 : i32, i32
  }
  func.func @transform_10(%arg0: i32) -> (i32, i32) {
    %c0_i32 = arith.constant 0 : i32
    %c0_i32_0 = arith.constant 0 : i32
    %c0_i32_1 = arith.constant 0 : i32
    return %c0_i32, %c0_i32_0 : i32, i32
  }
  func.func @transform_11(%arg0: i32) -> (i32, i32) {
    %c0_i32 = arith.constant 0 : i32
    %c0_i32_0 = arith.constant 0 : i32
    %c0_i32_1 = arith.constant 0 : i32
    return %c0_i32, %c0_i32_0 : i32, i32
  }
  func.func @transform_12(%arg0: i32) -> (i32, i32) {
    %c0_i32 = arith.constant 0 : i32
    %c0_i32_0 = arith.constant 0 : i32
    %c0_i32_1 = arith.constant 0 : i32
    return %c0_i32, %c0_i32_0 : i32, i32
  }
  func.func @transform_13(%arg0: i32) -> (i32, i32) {
    %c0_i32 = arith.constant 0 : i32
    %c0_i32_0 = arith.constant 0 : i32
    %c0_i32_1 = arith.constant 0 : i32
    return %c0_i32, %c0_i32_0 : i32, i32
  }
  func.func @transform_14(%arg0: i32) -> (i32, i32) {
    %c0_i32 = arith.constant 0 : i32
    %c0_i32_0 = arith.constant 0 : i32
    return %arg0, %c0_i32 : i32, i32
  }
  func.func @transform_15(%arg0: i32) -> (i32, i32) {
    %c0_i32 = arith.constant 0 : i32
    %c0_i32_0 = arith.constant 0 : i32
    return %arg0, %c0_i32 : i32, i32
  }
}

</mosaic_0001>

<llo_original>
// kernel: actor_critic_forward.1
$region0: #{actor_critic_forward.1}
  #allocation0 [shape = 'u32[]', space=smem, size = 0x4, offset = 0x4, fixed_abs, tag = 'smem constant byte address 0x4 - core index']
  #allocation1 [shape = 'u32[144,128]{1,0:T(1,128)}', space=vmem, size = 0x12000, scoped, tag = 'internal scratch']
  %s0 = inlined_call_operand.vmem [shape: f32[8,32], index: 0, kind: input, shape index: {}]
  %s1 = inlined_call_operand.vmem [shape: f32[8,48], index: 1, kind: input, shape index: {}]
  %s2 = inlined_call_operand.vmem [shape: bf16[32,32], index: 2, kind: input, shape index: {}]
  %s3 = inlined_call_operand.vmem [shape: f32[1,32], index: 3, kind: input, shape index: {}]
  %s4 = inlined_call_operand.vmem [shape: bf16[32,32], index: 4, kind: input, shape index: {}]
  %s5 = inlined_call_operand.vmem [shape: f32[1,32], index: 5, kind: input, shape index: {}]
  %s6 = inlined_call_operand.vmem [shape: bf16[32,128], index: 6, kind: input, shape index: {}]
  %s7 = inlined_call_operand.vmem [shape: f32[1,128], index: 7, kind: input, shape index: {}]
  %s8 = inlined_call_operand.vmem [shape: bf16[48,32], index: 8, kind: input, shape index: {}]
  %s9 = inlined_call_operand.vmem [shape: f32[1,32], index: 9, kind: input, shape index: {}]
  %s10 = inlined_call_operand.vmem [shape: bf16[32,32], index: 10, kind: input, shape index: {}]
  %s11 = inlined_call_operand.vmem [shape: f32[1,32], index: 11, kind: input, shape index: {}]
  %s12 = inlined_call_operand.vmem [shape: bf16[32,128], index: 12, kind: input, shape index: {}]
  %s13 = inlined_call_operand.vmem [shape: f32[1,128], index: 13, kind: input, shape index: {}]
  %s14 = inlined_call_operand.hbm [shape: f32[8,128], index: 14, kind: output, shape index: {0}]
  %s15 = inlined_call_operand.vmem [shape: f32[8,128], index: 15, kind: output, shape index: {1}]
  %16 = xla_tuple %s14, %s15
  %s17 = sld [smem:[#allocation0]]
  $region74: #{actor_critic_forward.1} parent=0
    _
  %s19 = ssub.s32 1, %s17
  %s20 = scalar_select 0, %s19, %s17
  $region1: #{actor_critic_forward.1} parent=0
    #allocation2 [shape = 'u8[4096]{0}', space=vmem, size = 0x1000, scoped, tag = 'output window, operand 0, single buffered']
    #allocation3 [shape = 's32[1]{0}', space=sflag, size = 0x4, scoped, tag = 'scoped memory for actor_critic_forward.1']
    %21 = vsyncpa [#allocation3], 0
    // Predicated region
    $region2: #{actor_critic_forward.1} parent=1 // pred_check
      _
    $region3: #{actor_critic_forward.1} parent=1 // pred_check_branch
      %23 = sbr.rel (0) target = $region5
    $region4: #{actor_critic_forward.1} parent=1 // pred_region
      _
    $region5: #{actor_critic_forward.1} parent=1 // pred_fallthru
      _
    // Predicated region
    $region6: #{actor_critic_forward.1} parent=1 // pred_check
      _
    $region7: #{actor_critic_forward.1} parent=1 // pred_check_branch
      %25 = sbr.rel (0) target = $region9
    $region8: #{actor_critic_forward.1} parent=1 // pred_region
      _
    $region9: #{actor_critic_forward.1} parent=1 // pred_fallthru
      _
    // Predicated region
    $region10: #{actor_critic_forward.1} parent=1 // pred_check
      _
    $region11: #{actor_critic_forward.1} parent=1 // pred_check_branch
      %27 = sbr.rel (0) target = $region13
    $region12: #{actor_critic_forward.1} parent=1 // pred_region
      _
    $region13: #{actor_critic_forward.1} parent=1 // pred_fallthru
      _
    // Predicated region
    $region14: #{actor_critic_forward.1} parent=1 // pred_check
      _
    $region15: #{actor_critic_forward.1} parent=1 // pred_check_branch
      %29 = sbr.rel (0) target = $region17
    $region16: #{actor_critic_forward.1} parent=1 // pred_region
      _
    $region17: #{actor_critic_forward.1} parent=1 // pred_fallthru
      _
    // Predicated region
    $region18: #{actor_critic_forward.1} parent=1 // pred_check
      _
    $region19: #{actor_critic_forward.1} parent=1 // pred_check_branch
      %31 = sbr.rel (0) target = $region21
    $region20: #{actor_critic_forward.1} parent=1 // pred_region
      _
    $region21: #{actor_critic_forward.1} parent=1 // pred_fallthru
      _
    // Predicated region
    $region22: #{actor_critic_forward.1} parent=1 // pred_check
      _
    $region23: #{actor_critic_forward.1} parent=1 // pred_check_branch
      %33 = sbr.rel (0) target = $region25
    $region24: #{actor_critic_forward.1} parent=1 // pred_region
      _
    $region25: #{actor_critic_forward.1} parent=1 // pred_fallthru
      _
    // Predicated region
    $region26: #{actor_critic_forward.1} parent=1 // pred_check
      _
    $region27: #{actor_critic_forward.1} parent=1 // pred_check_branch
      %35 = sbr.rel (0) target = $region29
    $region28: #{actor_critic_forward.1} parent=1 // pred_region
      _
    $region29: #{actor_critic_forward.1} parent=1 // pred_fallthru
      _
    // Predicated region
    $region30: #{actor_critic_forward.1} parent=1 // pred_check
      _
    $region31: #{actor_critic_forward.1} parent=1 // pred_check_branch
      %37 = sbr.rel (0) target = $region33
    $region32: #{actor_critic_forward.1} parent=1 // pred_region
      _
    $region33: #{actor_critic_forward.1} parent=1 // pred_fallthru
      _
    // Predicated region
    $region34: #{actor_critic_forward.1} parent=1 // pred_check
      _
    $region35: #{actor_critic_forward.1} parent=1 // pred_check_branch
      %39 = sbr.rel (0) target = $region37
    $region36: #{actor_critic_forward.1} parent=1 // pred_region
      _
    $region37: #{actor_critic_forward.1} parent=1 // pred_fallthru
      _
    // Predicated region
    $region38: #{actor_critic_forward.1} parent=1 // pred_check
      _
    $region39: #{actor_critic_forward.1} parent=1 // pred_check_branch
      %41 = sbr.rel (0) target = $region41
    $region40: #{actor_critic_forward.1} parent=1 // pred_region
      _
    $region41: #{actor_critic_forward.1} parent=1 // pred_fallthru
      _
    // Predicated region
    $region42: #{actor_critic_forward.1} parent=1 // pred_check
      _
    $region43: #{actor_critic_forward.1} parent=1 // pred_check_branch
      %43 = sbr.rel (0) target = $region45
    $region44: #{actor_critic_forward.1} parent=1 // pred_region
      _
    $region45: #{actor_critic_forward.1} parent=1 // pred_fallthru
      _
    // Predicated region
    $region46: #{actor_critic_forward.1} parent=1 // pred_check
      _
    $region47: #{actor_critic_forward.1} parent=1 // pred_check_branch
      %45 = sbr.rel (0) target = $region49
    $region48: #{actor_critic_forward.1} parent=1 // pred_region
      _
    $region49: #{actor_critic_forward.1} parent=1 // pred_fallthru
      _
    // Predicated region
    $region50: #{actor_critic_forward.1} parent=1 // pred_check
      _
    $region51: #{actor_critic_forward.1} parent=1 // pred_check_branch
      %47 = sbr.rel (0) target = $region53
    $region52: #{actor_critic_forward.1} parent=1 // pred_region
      _
    $region53: #{actor_critic_forward.1} parent=1 // pred_fallthru
      _
    // Predicated region
    $region54: #{actor_critic_forward.1} parent=1 // pred_check
      _
    $region55: #{actor_critic_forward.1} parent=1 // pred_check_branch
      %49 = sbr.rel (0) target = $region57
    $region56: #{actor_critic_forward.1} parent=1 // pred_region
      _
    $region57: #{actor_critic_forward.1} parent=1 // pred_fallthru
      _
    %v51 = vld [vmem:[%s0] sm:$0xff]
    %v52 = vpack.c.bf16 %v51, %v51
    %v53 = vld [vmem:[%s1] sm:$0xff]
    %v54 = vpack.c.bf16 %v53, %v53
    %v55 = vld [vmem:[%s2] sm:$0xf]
    %v56 = vld [vmem:[%s2 + $0x4] sm:$0xf]
    %v57 = vld [vmem:[%s2 + $0x8] sm:$0xf]
    %v58 = vld [vmem:[%s2 + $0xc] sm:$0xf]
    %v59 = vld [vmem:[%s3] sm:$0x1]
    %v61 = vlaneseq
    %v62 = vshrl.u32 %v61, 7
    %v63 = vsub.s32 0, %v62
    %v64 = vrot.slane %v59, %v63
    %v70 = vunpack.c.l.b16 %v55
    %v71 = vunpack.c.l.b16 %v56
    %v72 = vunpack.c.l.b16 %v57
    %v73 = vunpack.c.l.b16 %v58
    %v74 = vpack.c.b16 %v71, %v70
    %v75 = vpack.c.b16 %v73, %v72
    %vm78 = vcmask 261120
    %v80 = vsel %vm78, %v52, 0
    %82 = vmatprep.subr.bf16.mxu0 0
    %83 = vmatpush1.bf16.msra.mxu0 %v74
    %84 = vmatprep.subr.bf16.mxu0 0
    %85 = vmatpush1.bf16.msra.mxu0 %v75
    %86 = vmatprep.subr.bf16.mxu0 0
    %87 = vmatpush1.bf16.msra.mxu0 0
    %88 = vmatprep.subr.bf16.mxu0 0
    %89 = vmatpush1.bf16.msra.mxu0 0
    %90 = vmatprep.subr.bf16.mxu0 0
    %91 = vmatpush1.bf16.msra.mxu0 0
    %92 = vmatprep.subr.bf16.mxu0 0
    %93 = vmatpush1.bf16.msra.mxu0 0
    %94 = vmatprep.subr.bf16.mxu0 0
    %95 = vmatpush1.bf16.msra.mxu0 0
    %96 = vmatprep.subr.bf16.mxu0 0
    %97 = vmatpush1.bf16.msra.mxu0 0
    %98 = vmatprep.subr.bf16.mxu0 0
    %99 = vmatpush1.bf16.msra.mxu0 0
    %100 = vmatprep.subr.bf16.mxu0 0
    %101 = vmatpush1.bf16.msra.mxu0 0
    %102 = vmatprep.subr.bf16.mxu0 0
    %103 = vmatpush1.bf16.msra.mxu0 0
    %104 = vmatprep.subr.bf16.mxu0 0
    %105 = vmatpush1.bf16.msra.mxu0 0
    %106 = vmatprep.subr.bf16.mxu0 0
    %107 = vmatpush1.bf16.msra.mxu0 0
    %108 = vmatprep.subr.bf16.mxu0 0
    %109 = vmatpush1.bf16.msra.mxu0 0
    %110 = vmatprep.subr.bf16.mxu0 0
    %111 = vmatpush1.bf16.msra.mxu0 0
    %112 = vmatprep.subr.bf16.mxu0 0
    %113 = vmatpush1.bf16.msra.mxu0 0
    %114 = vmatprep.mubr.bf16.mxu0 0
    %115 = vmatmul.mubr.bf16.gmra.mrb[0].mxu0 %v80
    %v116 = vpop.f32.mrb[0].mxu0
    %v117 = vadd.f32 %v64, %v116
    %v118 = vpop.f32.mrb[0].mxu0
    %v119 = vpop.f32.mrb[0].mxu0
    %v120 = vpop.f32.mrb[0].mxu0
    %121 = vdwg.mxu0
    %v122 = vmax.f32 %v117, 0.0
    %v123 = vpack.c.bf16 %v122, %v122
    %v124 = vld [vmem:[%s4] sm:$0xf]
    %v125 = vld [vmem:[%s4 + $0x4] sm:$0xf]
    %v126 = vld [vmem:[%s4 + $0x8] sm:$0xf]
    %v127 = vld [vmem:[%s4 + $0xc] sm:$0xf]
    %v128 = vld [vmem:[%s5] sm:$0x1]
    %v130 = vlaneseq
    %v131 = vshrl.u32 %v130, 7
    %v132 = vsub.s32 0, %v131
    %v133 = vrot.slane %v128, %v132
    %v139 = vunpack.c.l.b16 %v124
    %v140 = vunpack.c.l.b16 %v125
    %v141 = vunpack.c.l.b16 %v126
    %v142 = vunpack.c.l.b16 %v127
    %v143 = vpack.c.b16 %v140, %v139
    %v144 = vpack.c.b16 %v142, %v141
    %v148 = vsel %vm78, %v123, 0
    %150 = vmatprep.subr.bf16.mxu0 0
    %151 = vmatpush1.bf16.msra.mxu0 %v143
    %152 = vmatprep.subr.bf16.mxu0 0
    %153 = vmatpush1.bf16.msra.mxu0 %v144
    %154 = vmatprep.subr.bf16.mxu0 0
    %155 = vmatpush1.bf16.msra.mxu0 0
    %156 = vmatprep.subr.bf16.mxu0 0
    %157 = vmatpush1.bf16.msra.mxu0 0
    %158 = vmatprep.subr.bf16.mxu0 0
    %159 = vmatpush1.bf16.msra.mxu0 0
    %160 = vmatprep.subr.bf16.mxu0 0
    %161 = vmatpush1.bf16.msra.mxu0 0
    %162 = vmatprep.subr.bf16.mxu0 0
    %163 = vmatpush1.bf16.msra.mxu0 0
    %164 = vmatprep.subr.bf16.mxu0 0
    %165 = vmatpush1.bf16.msra.mxu0 0
    %166 = vmatprep.subr.bf16.mxu0 0
    %167 = vmatpush1.bf16.msra.mxu0 0
    %168 = vmatprep.subr.bf16.mxu0 0
    %169 = vmatpush1.bf16.msra.mxu0 0
    %170 = vmatprep.subr.bf16.mxu0 0
    %171 = vmatpush1.bf16.msra.mxu0 0
    %172 = vmatprep.subr.bf16.mxu0 0
    %173 = vmatpush1.bf16.msra.mxu0 0
    %174 = vmatprep.subr.bf16.mxu0 0
    %175 = vmatpush1.bf16.msra.mxu0 0
    %176 = vmatprep.subr.bf16.mxu0 0
    %177 = vmatpush1.bf16.msra.mxu0 0
    %178 = vmatprep.subr.bf16.mxu0 0
    %179 = vmatpush1.bf16.msra.mxu0 0
    %180 = vmatprep.subr.bf16.mxu0 0
    %181 = vmatpush1.bf16.msra.mxu0 0
    %182 = vmatprep.mubr.bf16.mxu0 0
    %183 = vmatmul.mubr.bf16.gmra.mrb[0].mxu0 %v148
    %v184 = vpop.f32.mrb[0].mxu0
    %v185 = vadd.f32 %v133, %v184
    %v186 = vpop.f32.mrb[0].mxu0
    %v187 = vpop.f32.mrb[0].mxu0
    %v188 = vpop.f32.mrb[0].mxu0
    %189 = vdwg.mxu0
    %v190 = vmax.f32 %v185, 0.0
    %v191 = vpack.c.bf16 %v190, %v190
    %v192 = vld [vmem:[%s6] sm:$0xf]
    %v193 = vld [vmem:[%s6 + $0x4] sm:$0xf]
    %v194 = vld [vmem:[%s6 + $0x8] sm:$0xf]
    %v195 = vld [vmem:[%s6 + $0xc] sm:$0xf]
    %v196 = vld [vmem:[%s7] sm:$0x1]
    %v198 = vlaneseq
    %v199 = vshrl.u32 %v198, 7
    %v200 = vsub.s32 0, %v199
    %v201 = vrot.slane %v196, %v200
    %v207 = vunpack.c.l.b16 %v192
    %v208 = vunpack.c.l.b16 %v193
    %v209 = vunpack.c.l.b16 %v194
    %v210 = vunpack.c.l.b16 %v195
    %v211 = vpack.c.b16 %v208, %v207
    %v212 = vpack.c.b16 %v210, %v209
    %v216 = vsel %vm78, %v191, 0
    %218 = vmatprep.subr.bf16.mxu0 0
    %219 = vmatpush1.bf16.msra.mxu0 %v211
    %220 = vmatprep.subr.bf16.mxu0 0
    %221 = vmatpush1.bf16.msra.mxu0 %v212
    %222 = vmatprep.subr.bf16.mxu0 0
    %223 = vmatpush1.bf16.msra.mxu0 0
    %224 = vmatprep.subr.bf16.mxu0 0
    %225 = vmatpush1.bf16.msra.mxu0 0
    %226 = vmatprep.subr.bf16.mxu0 0
    %227 = vmatpush1.bf16.msra.mxu0 0
    %228 = vmatprep.subr.bf16.mxu0 0
    %229 = vmatpush1.bf16.msra.mxu0 0
    %230 = vmatprep.subr.bf16.mxu0 0
    %231 = vmatpush1.bf16.msra.mxu0 0
    %232 = vmatprep.subr.bf16.mxu0 0
    %233 = vmatpush1.bf16.msra.mxu0 0
    %234 = vmatprep.subr.bf16.mxu0 0
    %235 = vmatpush1.bf16.msra.mxu0 0
    %236 = vmatprep.subr.bf16.mxu0 0
    %237 = vmatpush1.bf16.msra.mxu0 0
    %238 = vmatprep.subr.bf16.mxu0 0
    %239 = vmatpush1.bf16.msra.mxu0 0
    %240 = vmatprep.subr.bf16.mxu0 0
    %241 = vmatpush1.bf16.msra.mxu0 0
    %242 = vmatprep.subr.bf16.mxu0 0
    %243 = vmatpush1.bf16.msra.mxu0 0
    %244 = vmatprep.subr.bf16.mxu0 0
    %245 = vmatpush1.bf16.msra.mxu0 0
    %246 = vmatprep.subr.bf16.mxu0 0
    %247 = vmatpush1.bf16.msra.mxu0 0
    %248 = vmatprep.subr.bf16.mxu0 0
    %249 = vmatpush1.bf16.msra.mxu0 0
    %250 = vmatprep.mubr.bf16.mxu0 0
    %251 = vmatmul.mubr.bf16.gmra.mrb[0].mxu0 %v216
    %v252 = vpop.f32.mrb[0].mxu0
    %v253 = vadd.f32 %v201, %v252
    %v254 = vpop.f32.mrb[0].mxu0
    %v255 = vpop.f32.mrb[0].mxu0
    %v256 = vpop.f32.mrb[0].mxu0
    %257 = vdwg.mxu0
    %258 = vst [vmem:[#allocation2] sm:$0xff] %v253
    %v259 = vld [vmem:[%s8] sm:$0xf]
    %v260 = vld [vmem:[%s8 + $0x4] sm:$0xf]
    %v261 = vld [vmem:[%s8 + $0x8] sm:$0xf]
    %v262 = vld [vmem:[%s8 + $0xc] sm:$0xf]
    %v263 = vld [vmem:[%s8 + $0x10] sm:$0xf]
    %v264 = vld [vmem:[%s8 + $0x14] sm:$0xf]
    %v265 = vld [vmem:[%s9] sm:$0x1]
    %v267 = vlaneseq
    %v268 = vshrl.u32 %v267, 7
    %v269 = vsub.s32 0, %v268
    %v270 = vrot.slane %v265, %v269
    %v278 = vunpack.c.l.b16 %v259
    %v279 = vunpack.c.l.b16 %v260
    %v280 = vunpack.c.l.b16 %v261
    %v281 = vunpack.c.l.b16 %v262
    %v282 = vunpack.c.l.b16 %v263
    %v283 = vunpack.c.l.b16 %v264
    %v284 = vpack.c.b16 %v279, %v278
    %v285 = vpack.c.b16 %v281, %v280
    %v286 = vpack.c.b16 %v283, %v282
    %vm290 = vcmask 392192
    %v292 = vsel %vm290, %v54, 0
    %294 = vmatprep.subr.bf16.mxu0 0
    %295 = vmatpush1.bf16.msra.mxu0 %v284
    %296 = vmatprep.subr.bf16.mxu0 0
    %297 = vmatpush1.bf16.msra.mxu0 %v285
    %298 = vmatprep.subr.bf16.mxu0 0
    %299 = vmatpush1.bf16.msra.mxu0 %v286
    %300 = vmatprep.subr.bf16.mxu0 0
    %301 = vmatpush1.bf16.msra.mxu0 0
    %302 = vmatprep.subr.bf16.mxu0 0
    %303 = vmatpush1.bf16.msra.mxu0 0
    %304 = vmatprep.subr.bf16.mxu0 0
    %305 = vmatpush1.bf16.msra.mxu0 0
    %306 = vmatprep.subr.bf16.mxu0 0
    %307 = vmatpush1.bf16.msra.mxu0 0
    %308 = vmatprep.subr.bf16.mxu0 0
    %309 = vmatpush1.bf16.msra.mxu0 0
    %310 = vmatprep.subr.bf16.mxu0 0
    %311 = vmatpush1.bf16.msra.mxu0 0
    %312 = vmatprep.subr.bf16.mxu0 0
    %313 = vmatpush1.bf16.msra.mxu0 0
    %314 = vmatprep.subr.bf16.mxu0 0
    %315 = vmatpush1.bf16.msra.mxu0 0
    %316 = vmatprep.subr.bf16.mxu0 0
    %317 = vmatpush1.bf16.msra.mxu0 0
    %318 = vmatprep.subr.bf16.mxu0 0
    %319 = vmatpush1.bf16.msra.mxu0 0
    %320 = vmatprep.subr.bf16.mxu0 0
    %321 = vmatpush1.bf16.msra.mxu0 0
    %322 = vmatprep.subr.bf16.mxu0 0
    %323 = vmatpush1.bf16.msra.mxu0 0
    %324 = vmatprep.subr.bf16.mxu0 0
    %325 = vmatpush1.bf16.msra.mxu0 0
    %326 = vmatprep.mubr.bf16.mxu0 0
    %327 = vmatmul.mubr.bf16.gmra.mrb[0].mxu0 %v292
    %v328 = vpop.f32.mrb[0].mxu0
    %v329 = vadd.f32 %v270, %v328
    %v330 = vpop.f32.mrb[0].mxu0
    %v331 = vpop.f32.mrb[0].mxu0
    %v332 = vpop.f32.mrb[0].mxu0
    %333 = vdwg.mxu0
    %v334 = vmax.f32 %v329, 0.0
    %v335 = vpack.c.bf16 %v334, %v334
    %v336 = vld [vmem:[%s10] sm:$0xf]
    %v337 = vld [vmem:[%s10 + $0x4] sm:$0xf]
    %v338 = vld [vmem:[%s10 + $0x8] sm:$0xf]
    %v339 = vld [vmem:[%s10 + $0xc] sm:$0xf]
    %v340 = vld [vmem:[%s11] sm:$0x1]
    %v342 = vlaneseq
    %v343 = vshrl.u32 %v342, 7
    %v344 = vsub.s32 0, %v343
    %v345 = vrot.slane %v340, %v344
    %v351 = vunpack.c.l.b16 %v336
    %v352 = vunpack.c.l.b16 %v337
    %v353 = vunpack.c.l.b16 %v338
    %v354 = vunpack.c.l.b16 %v339
    %v355 = vpack.c.b16 %v352, %v351
    %v356 = vpack.c.b16 %v354, %v353
    %v360 = vsel %vm78, %v335, 0
    %362 = vmatprep.subr.bf16.mxu0 0
    %363 = vmatpush1.bf16.msra.mxu0 %v355
    %364 = vmatprep.subr.bf16.mxu0 0
    %365 = vmatpush1.bf16.msra.mxu0 %v356
    %366 = vmatprep.subr.bf16.mxu0 0
    %367 = vmatpush1.bf16.msra.mxu0 0
    %368 = vmatprep.subr.bf16.mxu0 0
    %369 = vmatpush1.bf16.msra.mxu0 0
    %370 = vmatprep.subr.bf16.mxu0 0
    %371 = vmatpush1.bf16.msra.mxu0 0
    %372 = vmatprep.subr.bf16.mxu0 0
    %373 = vmatpush1.bf16.msra.mxu0 0
    %374 = vmatprep.subr.bf16.mxu0 0
    %375 = vmatpush1.bf16.msra.mxu0 0
    %376 = vmatprep.subr.bf16.mxu0 0
    %377 = vmatpush1.bf16.msra.mxu0 0
    %378 = vmatprep.subr.bf16.mxu0 0
    %379 = vmatpush1.bf16.msra.mxu0 0
    %380 = vmatprep.subr.bf16.mxu0 0
    %381 = vmatpush1.bf16.msra.mxu0 0
    %382 = vmatprep.subr.bf16.mxu0 0
    %383 = vmatpush1.bf16.msra.mxu0 0
    %384 = vmatprep.subr.bf16.mxu0 0
    %385 = vmatpush1.bf16.msra.mxu0 0
    %386 = vmatprep.subr.bf16.mxu0 0
    %387 = vmatpush1.bf16.msra.mxu0 0
    %388 = vmatprep.subr.bf16.mxu0 0
    %389 = vmatpush1.bf16.msra.mxu0 0
    %390 = vmatprep.subr.bf16.mxu0 0
    %391 = vmatpush1.bf16.msra.mxu0 0
    %392 = vmatprep.subr.bf16.mxu0 0
    %393 = vmatpush1.bf16.msra.mxu0 0
    %394 = vmatprep.mubr.bf16.mxu0 0
    %395 = vmatmul.mubr.bf16.gmra.mrb[0].mxu0 %v360
    %v396 = vpop.f32.mrb[0].mxu0
    %v397 = vadd.f32 %v345, %v396
    %v398 = vpop.f32.mrb[0].mxu0
    %v399 = vpop.f32.mrb[0].mxu0
    %v400 = vpop.f32.mrb[0].mxu0
    %401 = vdwg.mxu0
    %v402 = vmax.f32 %v397, 0.0
    %v403 = vpack.c.bf16 %v402, %v402
    %v404 = vld [vmem:[%s12] sm:$0xf]
    %v405 = vld [vmem:[%s12 + $0x4] sm:$0xf]
    %v406 = vld [vmem:[%s12 + $0x8] sm:$0xf]
    %v407 = vld [vmem:[%s12 + $0xc] sm:$0xf]
    %v408 = vld [vmem:[%s13] sm:$0x1]
    %v410 = vlaneseq
    %v411 = vshrl.u32 %v410, 7
    %v412 = vsub.s32 0, %v411
    %v413 = vrot.slane %v408, %v412
    %v419 = vunpack.c.l.b16 %v404
    %v420 = vunpack.c.l.b16 %v405
    %v421 = vunpack.c.l.b16 %v406
    %v422 = vunpack.c.l.b16 %v407
    %v423 = vpack.c.b16 %v420, %v419
    %v424 = vpack.c.b16 %v422, %v421
    %v428 = vsel %vm78, %v403, 0
    %430 = vmatprep.subr.bf16.mxu0 0
    %431 = vmatpush1.bf16.msra.mxu0 %v423
    %432 = vmatprep.subr.bf16.mxu0 0
    %433 = vmatpush1.bf16.msra.mxu0 %v424
    %434 = vmatprep.subr.bf16.mxu0 0
    %435 = vmatpush1.bf16.msra.mxu0 0
    %436 = vmatprep.subr.bf16.mxu0 0
    %437 = vmatpush1.bf16.msra.mxu0 0
    %438 = vmatprep.subr.bf16.mxu0 0
    %439 = vmatpush1.bf16.msra.mxu0 0
    %440 = vmatprep.subr.bf16.mxu0 0
    %441 = vmatpush1.bf16.msra.mxu0 0
    %442 = vmatprep.subr.bf16.mxu0 0
    %443 = vmatpush1.bf16.msra.mxu0 0
    %444 = vmatprep.subr.bf16.mxu0 0
    %445 = vmatpush1.bf16.msra.mxu0 0
    %446 = vmatprep.subr.bf16.mxu0 0
    %447 = vmatpush1.bf16.msra.mxu0 0
    %448 = vmatprep.subr.bf16.mxu0 0
    %449 = vmatpush1.bf16.msra.mxu0 0
    %450 = vmatprep.subr.bf16.mxu0 0
    %451 = vmatpush1.bf16.msra.mxu0 0
    %452 = vmatprep.subr.bf16.mxu0 0
    %453 = vmatpush1.bf16.msra.mxu0 0
    %454 = vmatprep.subr.bf16.mxu0 0
    %455 = vmatpush1.bf16.msra.mxu0 0
    %456 = vmatprep.subr.bf16.mxu0 0
    %457 = vmatpush1.bf16.msra.mxu0 0
    %458 = vmatprep.subr.bf16.mxu0 0
    %459 = vmatpush1.bf16.msra.mxu0 0
    %460 = vmatprep.subr.bf16.mxu0 0
    %461 = vmatpush1.bf16.msra.mxu0 0
    %462 = vmatprep.mubr.bf16.mxu0 0
    %463 = vmatmul.mubr.bf16.gmra.mrb[0].mxu0 %v428
    %v464 = vpop.f32.mrb[0].mxu0
    %v465 = vadd.f32 %v413, %v464
    %v466 = vpop.f32.mrb[0].mxu0
    %v467 = vpop.f32.mrb[0].mxu0
    %v468 = vpop.f32.mrb[0].mxu0
    %469 = vdwg.mxu0
    %470 = vst [vmem:[%s15] sm:$0xff] %v465
    // Predicated region
    $region58: #{actor_critic_forward.1} parent=1 // pred_check
      _
    $region59: #{actor_critic_forward.1} parent=1 // pred_check_branch
      %472 = sbr.rel (0) target = $region61
    $region60: #{actor_critic_forward.1} parent=1 // pred_region
      %s474 = ssub.s32 128, 128
      %475 = vsyncadd [#allocation3], %s474
      %s477 = sshll.u32 [#allocation2], 4
      %s478 = int_to_ptr.vmem [resolvable:$true] %s477
      %480 = dma.vmem_to_hbm [thread:$0]  %s478, 128, %s14, [#allocation3]
    $region61: #{actor_critic_forward.1} parent=1 // pred_fallthru
      _
    // Predicated region
    $region62: #{actor_critic_forward.1} parent=1 // pred_check
      _
    $region63: #{actor_critic_forward.1} parent=1 // pred_check_branch
      %482 = sbr.rel (0) target = $region65
    $region64: #{actor_critic_forward.1} parent=1 // pred_region
      _
    $region65: #{actor_critic_forward.1} parent=1 // pred_fallthru
      _
    // Predicated region
    $region66: #{actor_critic_forward.1} parent=1 // pred_check
      _
    $region67: #{actor_critic_forward.1} parent=1 // pred_check_branch
      %484 = sbr.rel (0) target = $region69
    $region68: #{actor_critic_forward.1} parent=1 // pred_region
      %485 = dma.done [#allocation3], 128
    $region69: #{actor_critic_forward.1} parent=1 // pred_fallthru
      _
    // Predicated region
    $region70: #{actor_critic_forward.1} parent=1 // pred_check
      _
    $region71: #{actor_critic_forward.1} parent=1 // pred_check_branch
      %487 = sbr.rel (0) target = $region73
    $region72: #{actor_critic_forward.1} parent=1 // pred_region
      _
    $region73: #{actor_critic_forward.1} parent=1 // pred_fallthru
      _
    %488 = vsyncpa [#allocation3], 1

</llo_original>
